<compile_context>
chip_gen: v7x
topology: tpu7x:2x2x1
jax: 0.10.0
libtpu: 0.0.40
codegen_flags: <defaults>
</compile_context>

<pallas_src>
import math
import functools

import jax
import jax.numpy as jnp
from jax import lax
from jax.experimental import pallas as pl
from jax.experimental.pallas import tpu as pltpu

LANE = 128


def _round_up(n, m):
    return ((n + m - 1) // m) * m


def _gelu_exact(x):
    # Matches torch.nn.GELU() default (erf-based, exact).
    return 0.5 * x * (1.0 + lax.erf(x * (1.0 / math.sqrt(2.0))))


def _fused_mlp_kernel(x_ref, *refs, n_layers: int):
    """Fused (Linear -> GELU) * (n_layers-1) -> Linear.

    refs = (w0, b0, w1, b1, ..., w_{L-1}, b_{L-1}, out_ref).
    All intermediates live in vregs; the only store is the final out_ref write.
    """
    out_ref = refs[-1]
    h = x_ref[...]
    for i in range(n_layers):
        w = refs[2 * i][...]
        b = refs[2 * i + 1][...]           # (1, N) broadcasts over the batch tile
        h = jnp.dot(h, w, preferred_element_type=jnp.float32) + b
        if i < n_layers - 1:
            h = _gelu_exact(h)
    out_ref[...] = h.astype(out_ref.dtype)


def mlp_classifier_forward(params, x, *, max_batch_tile=256):
    """Forward pass of the whole MLP as a single fused Pallas TPU kernel.

    x: (M, input_dim) float32
    params: list of (w: (in, out), b: (out,)) float32 pairs
    returns: (M, num_heads) float32
    """
    M, _ = x.shape
    n_layers = len(params)
    num_heads = params[-1][0].shape[1]
    n_out_pad = _round_up(num_heads, LANE)   # lane-dense final store

    # Batch tiling: one tile if small, otherwise tiles of max_batch_tile rows.
    if M <= max_batch_tile:
        tm = M
    else:
        assert M % max_batch_tile == 0, "batch must be a multiple of the batch tile"
        tm = max_batch_tile
    grid = (M // tm,)

    # Assemble flat operands: x, then (w_i, b_i) for every layer.
    operands = [x]
    in_specs = [pl.BlockSpec((tm, x.shape[1]), lambda i: (i, 0))]

    flops = 0
    transcendentals = 0
    bytes_accessed = x.size * x.dtype.itemsize
    for li, (w, b) in enumerate(params):
        k, n = w.shape
        if li == n_layers - 1 and n < n_out_pad:
            # Zero-pad the last layer to 128 output lanes (extra columns are 0).
            w = jnp.pad(w, ((0, 0), (0, n_out_pad - n)))
            b = jnp.pad(b, (0, n_out_pad - n))
            n = n_out_pad
        b2 = b.reshape(1, n)
        operands += [w, b2]
        # Constant block index => weights/biases stay resident across grid steps.
        in_specs += [
            pl.BlockSpec((k, n), lambda i: (0, 0)),
            pl.BlockSpec((1, n), lambda i: (0, 0)),
        ]
        flops += 2 * M * k * n
        bytes_accessed += w.size * w.dtype.itemsize + b2.size * b2.dtype.itemsize
        if li < n_layers - 1:
            transcendentals += M * n   # one erf per hidden activation element

    bytes_accessed += M * n_out_pad * 4

    kernel = functools.partial(_fused_mlp_kernel, n_layers=n_layers)
    out_padded = pl.pallas_call(
        kernel,
        out_shape=jax.ShapeDtypeStruct((M, n_out_pad), jnp.float32),
        grid=grid,
        in_specs=in_specs,
        out_specs=pl.BlockSpec((tm, n_out_pad), lambda i: (i, 0)),
        compiler_params=pltpu.CompilerParams(
            dimension_semantics=("parallel",)),
        cost_estimate=pl.CostEstimate(
            flops=flops,
            transcendentals=transcendentals,
            bytes_accessed=bytes_accessed),
    )(*operands)

    return out_padded[:, :num_heads]


def init_mlp_params(key, input_dim, num_heads, hidden_dims):
    """Deterministic init mimicking nn.Linear's default (uniform +/- 1/sqrt(fan_in))."""
    dims = [input_dim] + list(hidden_dims) + [num_heads]
    params = []
    for i in range(len(dims) - 1):
        in_dim, out_dim = dims[i], dims[i + 1]
        key, kw, kb = jax.random.split(key, 3)
        bound = 1.0 / math.sqrt(in_dim)
        # stored as [in, out] (transposed vs. PyTorch's [out, in])
        w = jax.random.uniform(kw, (in_dim, out_dim), jnp.float32, -bound, bound)
        b = jax.random.uniform(kb, (out_dim,), jnp.float32, -bound, bound)
        params.append((w, b))
    return params


def mlp_classifier_reference(params, x):
    """Plain-JAX reference for sanity checking."""
    n_layers = len(params)
    h = x
    for i, (w, b) in enumerate(params):
        h = h @ w + b
        if i != n_layers - 1:
            h = _gelu_exact(h)
    return h


if __name__ == "__main__":
    # Small shapes consistent with the module: batch=8, input_dim=32,
    # hidden_dims=[64, 32], num_heads=8.
    batch = 8
    input_dim = 32
    hidden_dims = [64, 32]
    num_heads = 8

    key = jax.random.PRNGKey(0)
    key, kx = jax.random.split(key)
    x = jax.random.normal(kx, (batch, input_dim), jnp.float32)

    params = init_mlp_params(key, input_dim, num_heads, hidden_dims)

    out = mlp_classifier_forward(params, x)
    out = jax.block_until_ready(out)

    ref = mlp_classifier_reference(params, x)
    assert out.shape == (batch, num_heads)
    assert jnp.allclose(out, ref, atol=1e-5, rtol=1e-5)

    print("KERNEL_OK")
</pallas_src>

<mosaic_0001>
module attributes {stable_mosaic.version = 11 : i64} {
  func.func @_fused_mlp_kernel(%arg0: i32, %arg1: memref<8x32xf32, #tpu.memory_space<vmem>>, %arg2: memref<32x64xf32, #tpu.memory_space<vmem>>, %arg3: memref<1x64xf32, #tpu.memory_space<vmem>>, %arg4: memref<64x32xf32, #tpu.memory_space<vmem>>, %arg5: memref<1x32xf32, #tpu.memory_space<vmem>>, %arg6: memref<32x128xf32, #tpu.memory_space<vmem>>, %arg7: memref<1x128xf32, #tpu.memory_space<vmem>>, %arg8: memref<8x128xf32, #tpu.memory_space<vmem>>) attributes {dimension_semantics = [#tpu.dimension_semantics<parallel>], iteration_bounds = array<i64: 1>, scalar_prefetch = 0 : i64, scratch_operands = 0 : i64, tpu.core_type = #tpu.core_type<tc>, window_params = [{transform_indices = @transform_0, window_bounds = array<i64: 8, 32>}, {pipeline_mode = #tpu.pipeline_mode<synchronous>, transform_indices = @transform_1, window_bounds = array<i64: 32, 64>}, {pipeline_mode = #tpu.pipeline_mode<synchronous>, transform_indices = @transform_2, window_bounds = array<i64: 1, 64>}, {pipeline_mode = #tpu.pipeline_mode<synchronous>, transform_indices = @transform_3, window_bounds = array<i64: 64, 32>}, {pipeline_mode = #tpu.pipeline_mode<synchronous>, transform_indices = @transform_4, window_bounds = array<i64: 1, 32>}, {pipeline_mode = #tpu.pipeline_mode<synchronous>, transform_indices = @transform_5, window_bounds = array<i64: 32, 128>}, {pipeline_mode = #tpu.pipeline_mode<synchronous>, transform_indices = @transform_6, window_bounds = array<i64: 1, 128>}, {transform_indices = @transform_7, window_bounds = array<i64: 8, 128>}]} {
    %c0 = arith.constant 0 : index
    %c0_0 = arith.constant 0 : index
    %0 = vector.load %arg1[%c0, %c0_0] : memref<8x32xf32, #tpu.memory_space<vmem>>, vector<8x32xf32>
    %c0_1 = arith.constant 0 : index
    %c0_2 = arith.constant 0 : index
    %1 = vector.load %arg2[%c0_1, %c0_2] : memref<32x64xf32, #tpu.memory_space<vmem>>, vector<32x64xf32>
    %c0_3 = arith.constant 0 : index
    %c0_4 = arith.constant 0 : index
    %2 = vector.load %arg3[%c0_3, %c0_4] : memref<1x64xf32, #tpu.memory_space<vmem>>, vector<1x64xf32>
    %cst = arith.constant dense<0.000000e+00> : vector<8x64xf32>
    %3 = tpu.matmul %0, %1, %cst {dimension_numbers = #tpu.dot_dimension_numbers<[1], [0], [0], [1], [0, 0, 1, 1], [], []>} : vector<8x32xf32>, vector<32x64xf32>, vector<8x64xf32> -> vector<8x64xf32>
    %4 = vector.broadcast %2 : vector<1x64xf32> to vector<8x64xf32>
    %5 = arith.addf %3, %4 : vector<8x64xf32>
    %cst_5 = arith.constant 5.000000e-01 : f32
    %6 = vector.broadcast %cst_5 : f32 to vector<8x64xf32>
    %7 = arith.mulf %6, %5 : vector<8x64xf32>
    %cst_6 = arith.constant 0.707106769 : f32
    %8 = vector.broadcast %cst_6 : f32 to vector<8x64xf32>
    %9 = arith.mulf %5, %8 : vector<8x64xf32>
    %10 = math.erf %9 : vector<8x64xf32>
    %cst_7 = arith.constant 1.000000e+00 : f32
    %11 = vector.broadcast %cst_7 : f32 to vector<8x64xf32>
    %12 = arith.addf %11, %10 : vector<8x64xf32>
    %13 = arith.mulf %7, %12 : vector<8x64xf32>
    %c0_8 = arith.constant 0 : index
    %c0_9 = arith.constant 0 : index
    %14 = vector.load %arg4[%c0_8, %c0_9] : memref<64x32xf32, #tpu.memory_space<vmem>>, vector<64x32xf32>
    %c0_10 = arith.constant 0 : index
    %c0_11 = arith.constant 0 : index
    %15 = vector.load %arg5[%c0_10, %c0_11] : memref<1x32xf32, #tpu.memory_space<vmem>>, vector<1x32xf32>
    %cst_12 = arith.constant dense<0.000000e+00> : vector<8x32xf32>
    %16 = tpu.matmul %13, %14, %cst_12 {dimension_numbers = #tpu.dot_dimension_numbers<[1], [0], [0], [1], [0, 0, 1, 1], [], []>} : vector<8x64xf32>, vector<64x32xf32>, vector<8x32xf32> -> vector<8x32xf32>
    %17 = vector.broadcast %15 : vector<1x32xf32> to vector<8x32xf32>
    %18 = arith.addf %16, %17 : vector<8x32xf32>
    %cst_13 = arith.constant 5.000000e-01 : f32
    %19 = vector.broadcast %cst_13 : f32 to vector<8x32xf32>
    %20 = arith.mulf %19, %18 : vector<8x32xf32>
    %cst_14 = arith.constant 0.707106769 : f32
    %21 = vector.broadcast %cst_14 : f32 to vector<8x32xf32>
    %22 = arith.mulf %18, %21 : vector<8x32xf32>
    %23 = math.erf %22 : vector<8x32xf32>
    %cst_15 = arith.constant 1.000000e+00 : f32
    %24 = vector.broadcast %cst_15 : f32 to vector<8x32xf32>
    %25 = arith.addf %24, %23 : vector<8x32xf32>
    %26 = arith.mulf %20, %25 : vector<8x32xf32>
    %c0_16 = arith.constant 0 : index
    %c0_17 = arith.constant 0 : index
    %27 = vector.load %arg6[%c0_16, %c0_17] : memref<32x128xf32, #tpu.memory_space<vmem>>, vector<32x128xf32>
    %c0_18 = arith.constant 0 : index
    %c0_19 = arith.constant 0 : index
    %28 = vector.load %arg7[%c0_18, %c0_19] : memref<1x128xf32, #tpu.memory_space<vmem>>, vector<1x128xf32>
    %cst_20 = arith.constant dense<0.000000e+00> : vector<8x128xf32>
    %29 = tpu.matmul %26, %27, %cst_20 {dimension_numbers = #tpu.dot_dimension_numbers<[1], [0], [0], [1], [0, 0, 1, 1], [], []>} : vector<8x32xf32>, vector<32x128xf32>, vector<8x128xf32> -> vector<8x128xf32>
    %30 = vector.broadcast %28 : vector<1x128xf32> to vector<8x128xf32>
    %31 = arith.addf %29, %30 : vector<8x128xf32>
    %c0_21 = arith.constant 0 : index
    %c0_22 = arith.constant 0 : index
    %32 = vector.load %arg8[%c0_21, %c0_22] : memref<8x128xf32, #tpu.memory_space<vmem>>, vector<8x128xf32>
    tpu.vector_store %arg8[%c0_21, %c0_22], %31 {strides = array<i32>} : memref<8x128xf32, #tpu.memory_space<vmem>>, vector<8x128xf32>,
    return
  }
  func.func @transform_0(%arg0: i32) -> (i32, i32) {
    %c0_i32 = arith.constant 0 : i32
    %c0_i32_0 = arith.constant 0 : i32
    return %arg0, %c0_i32 : i32, i32
  }
  func.func @transform_1(%arg0: i32) -> (i32, i32) {
    %c0_i32 = arith.constant 0 : i32
    %c0_i32_0 = arith.constant 0 : i32
    %c0_i32_1 = arith.constant 0 : i32
    return %c0_i32, %c0_i32_0 : i32, i32
  }
  func.func @transform_2(%arg0: i32) -> (i32, i32) {
    %c0_i32 = arith.constant 0 : i32
    %c0_i32_0 = arith.constant 0 : i32
    %c0_i32_1 = arith.constant 0 : i32
    return %c0_i32, %c0_i32_0 : i32, i32
  }
  func.func @transform_3(%arg0: i32) -> (i32, i32) {
    %c0_i32 = arith.constant 0 : i32
    %c0_i32_0 = arith.constant 0 : i32
    %c0_i32_1 = arith.constant 0 : i32
    return %c0_i32, %c0_i32_0 : i32, i32
  }
  func.func @transform_4(%arg0: i32) -> (i32, i32) {
    %c0_i32 = arith.constant 0 : i32
    %c0_i32_0 = arith.constant 0 : i32
    %c0_i32_1 = arith.constant 0 : i32
    return %c0_i32, %c0_i32_0 : i32, i32
  }
  func.func @transform_5(%arg0: i32) -> (i32, i32) {
    %c0_i32 = arith.constant 0 : i32
    %c0_i32_0 = arith.constant 0 : i32
    %c0_i32_1 = arith.constant 0 : i32
    return %c0_i32, %c0_i32_0 : i32, i32
  }
  func.func @transform_6(%arg0: i32) -> (i32, i32) {
    %c0_i32 = arith.constant 0 : i32
    %c0_i32_0 = arith.constant 0 : i32
    %c0_i32_1 = arith.constant 0 : i32
    return %c0_i32, %c0_i32_0 : i32, i32
  }
  func.func @transform_7(%arg0: i32) -> (i32, i32) {
    %c0_i32 = arith.constant 0 : i32
    %c0_i32_0 = arith.constant 0 : i32
    return %arg0, %c0_i32 : i32, i32
  }
}

</mosaic_0001>

<llo_original>
// kernel: tpu_custom_call.1
$region0: #{tpu_custom_call.1}
  #allocation0 [shape = 'u32[]', space=smem, size = 0x4, offset = 0x4, fixed_abs, tag = 'smem constant byte address 0x4 - core index']
  #allocation1 [shape = 'u32[144,128]{1,0:T(1,128)}', space=vmem, size = 0x12000, scoped, tag = 'internal scratch']
  %s0 = inlined_call_operand.vmem [shape: f32[8,32], index: 0, kind: input, shape index: {}]
  %s1 = inlined_call_operand.vmem [shape: f32[32,64], index: 1, kind: input, shape index: {}]
  %s2 = inlined_call_operand.vmem [shape: f32[1,64], index: 2, kind: input, shape index: {}]
  %s3 = inlined_call_operand.vmem [shape: f32[64,32], index: 3, kind: input, shape index: {}]
  %s4 = inlined_call_operand.vmem [shape: f32[1,32], index: 4, kind: input, shape index: {}]
  %s5 = inlined_call_operand.vmem [shape: f32[32,128], index: 5, kind: input, shape index: {}]
  %s6 = inlined_call_operand.vmem [shape: f32[1,128], index: 6, kind: input, shape index: {}]
  %s7 = inlined_call_operand.hbm [shape: f32[8,128], index: 7, kind: output, shape index: {}]
  %s8 = sld [smem:[#allocation0]]
  $region38: #{tpu_custom_call.1} parent=0
    _
  %s10 = ssub.s32 1, %s8
  %s11 = scalar_select 0, %s10, %s8
  $region1: #{tpu_custom_call.1} parent=0
    #allocation2 [shape = 'u8[4096]{0}', space=vmem, size = 0x1000, scoped, tag = 'output window, operand 0, single buffered']
    #allocation3 [shape = 's32[1]{0}', space=sflag, size = 0x4, scoped, tag = 'scoped memory for tpu_custom_call.1']
    %12 = vsyncpa [#allocation3], 0
    // Predicated region
    $region2: #{tpu_custom_call.1} parent=1 // pred_check
      _
    $region3: #{tpu_custom_call.1} parent=1 // pred_check_branch
      %14 = sbr.rel (0) target = $region5
    $region4: #{tpu_custom_call.1} parent=1 // pred_region
      _
    $region5: #{tpu_custom_call.1} parent=1 // pred_fallthru
      _
    // Predicated region
    $region6: #{tpu_custom_call.1} parent=1 // pred_check
      _
    $region7: #{tpu_custom_call.1} parent=1 // pred_check_branch
      %16 = sbr.rel (0) target = $region9
    $region8: #{tpu_custom_call.1} parent=1 // pred_region
      _
    $region9: #{tpu_custom_call.1} parent=1 // pred_fallthru
      _
    // Predicated region
    $region10: #{tpu_custom_call.1} parent=1 // pred_check
      _
    $region11: #{tpu_custom_call.1} parent=1 // pred_check_branch
      %18 = sbr.rel (0) target = $region13
    $region12: #{tpu_custom_call.1} parent=1 // pred_region
      _
    $region13: #{tpu_custom_call.1} parent=1 // pred_fallthru
      _
    // Predicated region
    $region14: #{tpu_custom_call.1} parent=1 // pred_check
      _
    $region15: #{tpu_custom_call.1} parent=1 // pred_check_branch
      %20 = sbr.rel (0) target = $region17
    $region16: #{tpu_custom_call.1} parent=1 // pred_region
      _
    $region17: #{tpu_custom_call.1} parent=1 // pred_fallthru
      _
    // Predicated region
    $region18: #{tpu_custom_call.1} parent=1 // pred_check
      _
    $region19: #{tpu_custom_call.1} parent=1 // pred_check_branch
      %22 = sbr.rel (0) target = $region21
    $region20: #{tpu_custom_call.1} parent=1 // pred_region
      _
    $region21: #{tpu_custom_call.1} parent=1 // pred_fallthru
      _
    // Predicated region
    $region22: #{tpu_custom_call.1} parent=1 // pred_check
      _
    $region23: #{tpu_custom_call.1} parent=1 // pred_check_branch
      %24 = sbr.rel (0) target = $region25
    $region24: #{tpu_custom_call.1} parent=1 // pred_region
      _
    $region25: #{tpu_custom_call.1} parent=1 // pred_fallthru
      _
    // Predicated region
    $region26: #{tpu_custom_call.1} parent=1 // pred_check
      _
    $region27: #{tpu_custom_call.1} parent=1 // pred_check_branch
      %26 = sbr.rel (0) target = $region29
    $region28: #{tpu_custom_call.1} parent=1 // pred_region
      _
    $region29: #{tpu_custom_call.1} parent=1 // pred_fallthru
      _
    %v27 = vld [vmem:[%s0] sm:$0xff]
    %v28 = vld [vmem:[%s1] sm:$0xff]
    %v29 = vld [vmem:[%s1 + $0x8] sm:$0xff]
    %v30 = vld [vmem:[%s1 + $0x10] sm:$0xff]
    %v31 = vld [vmem:[%s1 + $0x18] sm:$0xff]
    %v32 = vld [vmem:[%s2] sm:$0x1]
    %v34 = vlaneseq
    %v35 = vshrl.u32 %v34, 7
    %v36 = vsub.s32 0, %v35
    %v37 = vrot.slane %v32, %v36
    %vm39 = vcmask 261120
    %v41 = vsel %vm39, %v27, 0
    %43 = vmatprep.subr.mxu0 0.0
    %44 = vmatpush1.msra.mxu0 %v28
    %45 = vmatprep.subr.mxu0 0.0
    %46 = vmatpush1.msra.mxu0 %v29
    %47 = vmatprep.subr.mxu0 0.0
    %48 = vmatpush1.msra.mxu0 %v30
    %49 = vmatprep.subr.mxu0 0.0
    %50 = vmatpush1.msra.mxu0 %v31
    %51 = vmatprep.subr.mxu0 0.0
    %52 = vmatpush1.msra.mxu0 0.0
    %53 = vmatprep.subr.mxu0 0.0
    %54 = vmatpush1.msra.mxu0 0.0
    %55 = vmatprep.subr.mxu0 0.0
    %56 = vmatpush1.msra.mxu0 0.0
    %57 = vmatprep.subr.mxu0 0.0
    %58 = vmatpush1.msra.mxu0 0.0
    %59 = vmatprep.subr.mxu0 0.0
    %60 = vmatpush1.msra.mxu0 0.0
    %61 = vmatprep.subr.mxu0 0.0
    %62 = vmatpush1.msra.mxu0 0.0
    %63 = vmatprep.subr.mxu0 0.0
    %64 = vmatpush1.msra.mxu0 0.0
    %65 = vmatprep.subr.mxu0 0.0
    %66 = vmatpush1.msra.mxu0 0.0
    %67 = vmatprep.subr.mxu0 0.0
    %68 = vmatpush1.msra.mxu0 0.0
    %69 = vmatprep.subr.mxu0 0.0
    %70 = vmatpush1.msra.mxu0 0.0
    %71 = vmatprep.subr.mxu0 0.0
    %72 = vmatpush1.msra.mxu0 0.0
    %73 = vmatprep.subr.mxu0 0.0
    %74 = vmatpush1.msra.mxu0 0.0
    %75 = vmatprep.subr.mxu0 0.0
    %76 = vmatpush1.msra.mxu0 0.0
    %77 = vmatprep.subr.mxu0 0.0
    %78 = vmatpush1.msra.mxu0 0.0
    %79 = vmatprep.subr.mxu0 0.0
    %80 = vmatpush1.msra.mxu0 0.0
    %81 = vmatprep.subr.mxu0 0.0
    %82 = vmatpush1.msra.mxu0 0.0
    %83 = vmatprep.subr.mxu0 0.0
    %84 = vmatpush1.msra.mxu0 0.0
    %85 = vmatprep.subr.mxu0 0.0
    %86 = vmatpush1.msra.mxu0 0.0
    %87 = vmatprep.subr.mxu0 0.0
    %88 = vmatpush1.msra.mxu0 0.0
    %89 = vmatprep.subr.mxu0 0.0
    %90 = vmatpush1.msra.mxu0 0.0
    %91 = vmatprep.subr.mxu0 0.0
    %92 = vmatpush1.msra.mxu0 0.0
    %93 = vmatprep.subr.mxu0 0.0
    %94 = vmatpush1.msra.mxu0 0.0
    %95 = vmatprep.subr.mxu0 0.0
    %96 = vmatpush1.msra.mxu0 0.0
    %97 = vmatprep.subr.mxu0 0.0
    %98 = vmatpush1.msra.mxu0 0.0
    %99 = vmatprep.subr.mxu0 0.0
    %100 = vmatpush1.msra.mxu0 0.0
    %101 = vmatprep.subr.mxu0 0.0
    %102 = vmatpush1.msra.mxu0 0.0
    %103 = vmatprep.subr.mxu0 0.0
    %104 = vmatpush1.msra.mxu0 0.0
    %105 = vmatprep.subr.mxu0 0.0
    %106 = vmatpush1.msra.mxu0 0.0
    %107 = vmatprep.mubr.f32.mxu0 0.0
    %108 = vmatmul.mubr.f32.gmra.mrb[0].mxu0 %v41
    %v109 = vpop.f32.mrb[0].mxu0
    %v110 = vadd.f32 %v37, %v109
    %v111 = vpop.f32.mrb[0].mxu0
    %112 = vdwg.mxu0
    %v113 = vmul.f32 %v110, 0.5
    %v114 = vmul.f32 %v110, 0.70710677
    %v115 = verf.f32.pop %v114
    %v116 = vadd.f32 %v115, 1.0
    %v117 = vmul.f32 %v113, %v116
    %v118 = vld [vmem:[%s3] sm:$0xff]
    %v119 = vld [vmem:[%s3 + $0x8] sm:$0xff]
    %v120 = vld [vmem:[%s3 + $0x10] sm:$0xff]
    %v121 = vld [vmem:[%s3 + $0x18] sm:$0xff]
    %v122 = vld [vmem:[%s3 + $0x20] sm:$0xff]
    %v123 = vld [vmem:[%s3 + $0x28] sm:$0xff]
    %v124 = vld [vmem:[%s3 + $0x30] sm:$0xff]
    %v125 = vld [vmem:[%s3 + $0x38] sm:$0xff]
    %v126 = vld [vmem:[%s4] sm:$0x1]
    %v128 = vlaneseq
    %v129 = vshrl.u32 %v128, 7
    %v130 = vsub.s32 0, %v129
    %v131 = vrot.slane %v126, %v130
    %vm133 = vcmask 523264
    %v135 = vsel %vm133, %v117, 0
    %137 = vmatprep.subr.mxu0 0.0
    %138 = vmatpush1.msra.mxu0 %v118
    %139 = vmatprep.subr.mxu0 0.0
    %140 = vmatpush1.msra.mxu0 %v119
    %141 = vmatprep.subr.mxu0 0.0
    %142 = vmatpush1.msra.mxu0 %v120
    %143 = vmatprep.subr.mxu0 0.0
    %144 = vmatpush1.msra.mxu0 %v121
    %145 = vmatprep.subr.mxu0 0.0
    %146 = vmatpush1.msra.mxu0 %v122
    %147 = vmatprep.subr.mxu0 0.0
    %148 = vmatpush1.msra.mxu0 %v123
    %149 = vmatprep.subr.mxu0 0.0
    %150 = vmatpush1.msra.mxu0 %v124
    %151 = vmatprep.subr.mxu0 0.0
    %152 = vmatpush1.msra.mxu0 %v125
    %153 = vmatprep.subr.mxu0 0.0
    %154 = vmatpush1.msra.mxu0 0.0
    %155 = vmatprep.subr.mxu0 0.0
    %156 = vmatpush1.msra.mxu0 0.0
    %157 = vmatprep.subr.mxu0 0.0
    %158 = vmatpush1.msra.mxu0 0.0
    %159 = vmatprep.subr.mxu0 0.0
    %160 = vmatpush1.msra.mxu0 0.0
    %161 = vmatprep.subr.mxu0 0.0
    %162 = vmatpush1.msra.mxu0 0.0
    %163 = vmatprep.subr.mxu0 0.0
    %164 = vmatpush1.msra.mxu0 0.0
    %165 = vmatprep.subr.mxu0 0.0
    %166 = vmatpush1.msra.mxu0 0.0
    %167 = vmatprep.subr.mxu0 0.0
    %168 = vmatpush1.msra.mxu0 0.0
    %169 = vmatprep.subr.mxu0 0.0
    %170 = vmatpush1.msra.mxu0 0.0
    %171 = vmatprep.subr.mxu0 0.0
    %172 = vmatpush1.msra.mxu0 0.0
    %173 = vmatprep.subr.mxu0 0.0
    %174 = vmatpush1.msra.mxu0 0.0
    %175 = vmatprep.subr.mxu0 0.0
    %176 = vmatpush1.msra.mxu0 0.0
    %177 = vmatprep.subr.mxu0 0.0
    %178 = vmatpush1.msra.mxu0 0.0
    %179 = vmatprep.subr.mxu0 0.0
    %180 = vmatpush1.msra.mxu0 0.0
    %181 = vmatprep.subr.mxu0 0.0
    %182 = vmatpush1.msra.mxu0 0.0
    %183 = vmatprep.subr.mxu0 0.0
    %184 = vmatpush1.msra.mxu0 0.0
    %185 = vmatprep.subr.mxu0 0.0
    %186 = vmatpush1.msra.mxu0 0.0
    %187 = vmatprep.subr.mxu0 0.0
    %188 = vmatpush1.msra.mxu0 0.0
    %189 = vmatprep.subr.mxu0 0.0
    %190 = vmatpush1.msra.mxu0 0.0
    %191 = vmatprep.subr.mxu0 0.0
    %192 = vmatpush1.msra.mxu0 0.0
    %193 = vmatprep.subr.mxu0 0.0
    %194 = vmatpush1.msra.mxu0 0.0
    %195 = vmatprep.subr.mxu0 0.0
    %196 = vmatpush1.msra.mxu0 0.0
    %197 = vmatprep.subr.mxu0 0.0
    %198 = vmatpush1.msra.mxu0 0.0
    %199 = vmatprep.subr.mxu0 0.0
    %200 = vmatpush1.msra.mxu0 0.0
    %201 = vmatprep.mubr.f32.mxu0 0.0
    %202 = vmatmul.mubr.f32.gmra.mrb[0].mxu0 %v135
    %v203 = vpop.f32.mrb[0].mxu0
    %v204 = vadd.f32 %v131, %v203
    %v205 = vpop.f32.mrb[0].mxu0
    %206 = vdwg.mxu0
    %v207 = vmul.f32 %v204, 0.5
    %v208 = vmul.f32 %v204, 0.70710677
    %v209 = verf.f32.pop %v208
    %v210 = vadd.f32 %v209, 1.0
    %v211 = vmul.f32 %v207, %v210
    %v212 = vld [vmem:[%s5] sm:$0xff]
    %v213 = vld [vmem:[%s5 + $0x8] sm:$0xff]
    %v214 = vld [vmem:[%s5 + $0x10] sm:$0xff]
    %v215 = vld [vmem:[%s5 + $0x18] sm:$0xff]
    %v216 = vld [vmem:[%s6] sm:$0x1]
    %v218 = vlaneseq
    %v219 = vshrl.u32 %v218, 7
    %v220 = vsub.s32 0, %v219
    %v221 = vrot.slane %v216, %v220
    %v224 = vsel %vm39, %v211, 0
    %226 = vmatprep.subr.mxu0 0.0
    %227 = vmatpush1.msra.mxu0 %v212
    %228 = vmatprep.subr.mxu0 0.0
    %229 = vmatpush1.msra.mxu0 %v213
    %230 = vmatprep.subr.mxu0 0.0
    %231 = vmatpush1.msra.mxu0 %v214
    %232 = vmatprep.subr.mxu0 0.0
    %233 = vmatpush1.msra.mxu0 %v215
    %234 = vmatprep.subr.mxu0 0.0
    %235 = vmatpush1.msra.mxu0 0.0
    %236 = vmatprep.subr.mxu0 0.0
    %237 = vmatpush1.msra.mxu0 0.0
    %238 = vmatprep.subr.mxu0 0.0
    %239 = vmatpush1.msra.mxu0 0.0
    %240 = vmatprep.subr.mxu0 0.0
    %241 = vmatpush1.msra.mxu0 0.0
    %242 = vmatprep.subr.mxu0 0.0
    %243 = vmatpush1.msra.mxu0 0.0
    %244 = vmatprep.subr.mxu0 0.0
    %245 = vmatpush1.msra.mxu0 0.0
    %246 = vmatprep.subr.mxu0 0.0
    %247 = vmatpush1.msra.mxu0 0.0
    %248 = vmatprep.subr.mxu0 0.0
    %249 = vmatpush1.msra.mxu0 0.0
    %250 = vmatprep.subr.mxu0 0.0
    %251 = vmatpush1.msra.mxu0 0.0
    %252 = vmatprep.subr.mxu0 0.0
    %253 = vmatpush1.msra.mxu0 0.0
    %254 = vmatprep.subr.mxu0 0.0
    %255 = vmatpush1.msra.mxu0 0.0
    %256 = vmatprep.subr.mxu0 0.0
    %257 = vmatpush1.msra.mxu0 0.0
    %258 = vmatprep.subr.mxu0 0.0
    %259 = vmatpush1.msra.mxu0 0.0
    %260 = vmatprep.subr.mxu0 0.0
    %261 = vmatpush1.msra.mxu0 0.0
    %262 = vmatprep.subr.mxu0 0.0
    %263 = vmatpush1.msra.mxu0 0.0
    %264 = vmatprep.subr.mxu0 0.0
    %265 = vmatpush1.msra.mxu0 0.0
    %266 = vmatprep.subr.mxu0 0.0
    %267 = vmatpush1.msra.mxu0 0.0
    %268 = vmatprep.subr.mxu0 0.0
    %269 = vmatpush1.msra.mxu0 0.0
    %270 = vmatprep.subr.mxu0 0.0
    %271 = vmatpush1.msra.mxu0 0.0
    %272 = vmatprep.subr.mxu0 0.0
    %273 = vmatpush1.msra.mxu0 0.0
    %274 = vmatprep.subr.mxu0 0.0
    %275 = vmatpush1.msra.mxu0 0.0
    %276 = vmatprep.subr.mxu0 0.0
    %277 = vmatpush1.msra.mxu0 0.0
    %278 = vmatprep.subr.mxu0 0.0
    %279 = vmatpush1.msra.mxu0 0.0
    %280 = vmatprep.subr.mxu0 0.0
    %281 = vmatpush1.msra.mxu0 0.0
    %282 = vmatprep.subr.mxu0 0.0
    %283 = vmatpush1.msra.mxu0 0.0
    %284 = vmatprep.subr.mxu0 0.0
    %285 = vmatpush1.msra.mxu0 0.0
    %286 = vmatprep.subr.mxu0 0.0
    %287 = vmatpush1.msra.mxu0 0.0
    %288 = vmatprep.subr.mxu0 0.0
    %289 = vmatpush1.msra.mxu0 0.0
    %290 = vmatprep.mubr.f32.mxu0 0.0
    %291 = vmatmul.mubr.f32.gmra.mrb[0].mxu0 %v224
    %v292 = vpop.f32.mrb[0].mxu0
    %v293 = vadd.f32 %v221, %v292
    %v294 = vpop.f32.mrb[0].mxu0
    %295 = vdwg.mxu0
    %296 = vst [vmem:[#allocation2] sm:$0xff] %v293
    // Predicated region
    $region30: #{tpu_custom_call.1} parent=1 // pred_check
      _
    $region31: #{tpu_custom_call.1} parent=1 // pred_check_branch
      %298 = sbr.rel (0) target = $region33
    $region32: #{tpu_custom_call.1} parent=1 // pred_region
      %s300 = ssub.s32 128, 128
      %301 = vsyncadd [#allocation3], %s300
      %s303 = sshll.u32 [#allocation2], 4
      %s304 = int_to_ptr.vmem [resolvable:$true] %s303
      %306 = dma.vmem_to_hbm [thread:$0]  %s304, 128, %s7, [#allocation3]
    $region33: #{tpu_custom_call.1} parent=1 // pred_fallthru
      _
    // Predicated region
    $region34: #{tpu_custom_call.1} parent=1 // pred_check
      _
    $region35: #{tpu_custom_call.1} parent=1 // pred_check_branch
      %308 = sbr.rel (0) target = $region37
    $region36: #{tpu_custom_call.1} parent=1 // pred_region
      %309 = dma.done [#allocation3], 128
    $region37: #{tpu_custom_call.1} parent=1 // pred_fallthru
      _
    %310 = vsyncpa [#allocation3], 1

</llo_original>
